<compile_context>
chip_gen: v7x
topology: tpu7x:2x2x1
jax: 0.10.0
libtpu: 0.0.40
codegen_flags: <defaults>
</compile_context>

<pallas_src>
import jax
import jax.numpy as jnp
from jax.experimental import pallas as pl
from jax.experimental.pallas import tpu as pltpu

HIDDEN = 256
LANE = 128
SUBLANE = 8


def dqn_kernel(x_ref, w1_ref, b1_ref, w2_ref, b2_ref,
               w3_ref, b3_ref, w4_ref, b4_ref, o_ref):
    # bf16 operands into the MXU, f32 accumulation, f32 bias-add/ReLU,
    # downcast to bf16 only to feed the next bf16 matmul.
    h = x_ref[...].astype(jnp.bfloat16)
    acc = jnp.dot(h, w1_ref[...], preferred_element_type=jnp.float32)
    h = jnp.maximum(acc + b1_ref[...], 0.0).astype(jnp.bfloat16)
    acc = jnp.dot(h, w2_ref[...], preferred_element_type=jnp.float32)
    h = jnp.maximum(acc + b2_ref[...], 0.0).astype(jnp.bfloat16)
    acc = jnp.dot(h, w3_ref[...], preferred_element_type=jnp.float32)
    h = jnp.maximum(acc + b3_ref[...], 0.0).astype(jnp.bfloat16)
    acc = jnp.dot(h, w4_ref[...], preferred_element_type=jnp.float32)
    o_ref[...] = (acc + b4_ref[...]).astype(o_ref.dtype)


def init_params(key, n_observations, n_actions):
    """f32 params mimicking nn.Linear's U(-1/sqrt(fan_in), +1/sqrt(fan_in)).
    Weights stored as (in_features, out_features) == PyTorch weight.T."""
    dims = [(n_observations, HIDDEN), (HIDDEN, HIDDEN),
            (HIDDEN, HIDDEN), (HIDDEN, n_actions)]
    params = {}
    for i, (fan_in, fan_out) in enumerate(dims, start=1):
        key, kw, kb = jax.random.split(key, 3)
        bound = 1.0 / jnp.sqrt(jnp.float32(fan_in))
        params[f"W{i}"] = jax.random.uniform(
            kw, (fan_in, fan_out), jnp.float32, -bound, bound)
        params[f"b{i}"] = jax.random.uniform(
            kb, (1, fan_out), jnp.float32, -bound, bound)
    return params


def prepare_params(params, n_actions):
    """One-time prep: cast weights to bf16, keep biases f32, and zero-pad the
    final layer's output dim to a lane-dense multiple of 128."""
    n_pad = ((n_actions + LANE - 1) // LANE) * LANE
    prepared = {}
    for i in (1, 2, 3):
        prepared[f"W{i}"] = params[f"W{i}"].astype(jnp.bfloat16)
        prepared[f"b{i}"] = params[f"b{i}"].astype(jnp.float32)
    pad_n = n_pad - n_actions
    prepared["W4"] = jnp.pad(params["W4"].astype(jnp.bfloat16),
                             ((0, 0), (0, pad_n)))
    prepared["b4"] = jnp.pad(params["b4"].astype(jnp.float32),
                             ((0, 0), (0, pad_n)))
    return prepared


def dqn_forward(x, prepared, n_actions):
    """x: (B, n_observations) f32; prepared: output of prepare_params."""
    B, n_obs = x.shape
    n_pad = prepared["W4"].shape[1]  # lane-dense padded action dim

    # Batch tile: 128 rows per grid step once the batch is big enough
    # (MXU-friendly M); otherwise round up to a sublane multiple.
    if B >= 128:
        tb = 128
    else:
        tb = ((B + SUBLANE - 1) // SUBLANE) * SUBLANE
    b_pad = pl.cdiv(B, tb) * tb
    if b_pad != B:
        x = jnp.pad(x, ((0, b_pad - B), (0, 0)))
    n_tiles = b_pad // tb

    args = (x,
            prepared["W1"], prepared["b1"],
            prepared["W2"], prepared["b2"],
            prepared["W3"], prepared["b3"],
            prepared["W4"], prepared["b4"])

    # Constant index maps => weights/biases DMA'd once, VMEM-resident across
    # all batch tiles; only x / out tiles stream (auto double-buffered).
    resident = lambda a: pl.BlockSpec(a.shape, lambda i: (0,) * a.ndim)
    in_specs = ([pl.BlockSpec((tb, n_obs), lambda i: (i, 0))]
                + [resident(a) for a in args[1:]])
    out_specs = pl.BlockSpec((tb, n_pad), lambda i: (i, 0))

    flops = 2 * b_pad * (n_obs * HIDDEN + 2 * HIDDEN * HIDDEN + HIDDEN * n_pad)
    bytes_accessed = int(sum(a.size * a.dtype.itemsize for a in args)
                         + b_pad * n_pad * 4)

    out = pl.pallas_call(
        dqn_kernel,
        out_shape=jax.ShapeDtypeStruct((b_pad, n_pad), jnp.float32),
        grid_spec=pl.GridSpec(
            grid=(n_tiles,),
            in_specs=in_specs,
            out_specs=out_specs,
        ),
        compiler_params=pltpu.CompilerParams(
            dimension_semantics=("parallel",),
            vmem_limit_bytes=16 << 20,
        ),
        cost_estimate=pl.CostEstimate(
            flops=flops, transcendentals=0, bytes_accessed=bytes_accessed),
    )(*args)

    return out[:B, :n_actions]


def dqn_reference(x, prepared, n_actions):
    """Pure-JAX reference using the exact same bf16/f32 arithmetic."""
    h = x.astype(jnp.bfloat16)
    for i in (1, 2, 3):
        acc = jnp.dot(h, prepared[f"W{i}"], preferred_element_type=jnp.float32)
        h = jnp.maximum(acc + prepared[f"b{i}"], 0.0).astype(jnp.bfloat16)
    acc = jnp.dot(h, prepared["W4"], preferred_element_type=jnp.float32)
    return (acc + prepared["b4"])[:, :n_actions]


if __name__ == "__main__":
    n_observations = 8   # len(state) from the synthetic environment
    n_actions = 10
    batch = 2

    key = jax.random.PRNGKey(0)
    key, kx = jax.random.split(key)
    x = jax.random.normal(kx, (batch, n_observations), jnp.float32)
    params = init_params(key, n_observations, n_actions)
    prepared = prepare_params(params, n_actions)

    out = dqn_forward(x, prepared, n_actions)
    out = jax.block_until_ready(out)

    ref = dqn_reference(x, prepared, n_actions)
    assert out.shape == (batch, n_actions)
    assert jnp.allclose(out, ref, atol=1e-3, rtol=1e-3), "mismatch vs JAX reference"

    print("KERNEL_OK")
</pallas_src>

<mosaic_0001>
module attributes {stable_mosaic.version = 11 : i64} {
  func.func @dqn_kernel(%arg0: i32, %arg1: memref<8x8xf32, #tpu.memory_space<vmem>>, %arg2: memref<8x256xbf16, #tpu.memory_space<vmem>>, %arg3: memref<1x256xf32, #tpu.memory_space<vmem>>, %arg4: memref<256x256xbf16, #tpu.memory_space<vmem>>, %arg5: memref<1x256xf32, #tpu.memory_space<vmem>>, %arg6: memref<256x256xbf16, #tpu.memory_space<vmem>>, %arg7: memref<1x256xf32, #tpu.memory_space<vmem>>, %arg8: memref<256x128xbf16, #tpu.memory_space<vmem>>, %arg9: memref<1x128xf32, #tpu.memory_space<vmem>>, %arg10: memref<8x128xf32, #tpu.memory_space<vmem>>) attributes {dimension_semantics = [#tpu.dimension_semantics<parallel>], iteration_bounds = array<i64: 1>, scalar_prefetch = 0 : i64, scratch_operands = 0 : i64, tpu.core_type = #tpu.core_type<tc>, window_params = [{transform_indices = @transform_0, window_bounds = array<i64: 8, 8>}, {pipeline_mode = #tpu.pipeline_mode<synchronous>, transform_indices = @transform_1, window_bounds = array<i64: 8, 256>}, {pipeline_mode = #tpu.pipeline_mode<synchronous>, transform_indices = @transform_2, window_bounds = array<i64: 1, 256>}, {pipeline_mode = #tpu.pipeline_mode<synchronous>, transform_indices = @transform_3, window_bounds = array<i64: 256, 256>}, {pipeline_mode = #tpu.pipeline_mode<synchronous>, transform_indices = @transform_4, window_bounds = array<i64: 1, 256>}, {pipeline_mode = #tpu.pipeline_mode<synchronous>, transform_indices = @transform_5, window_bounds = array<i64: 256, 256>}, {pipeline_mode = #tpu.pipeline_mode<synchronous>, transform_indices = @transform_6, window_bounds = array<i64: 1, 256>}, {pipeline_mode = #tpu.pipeline_mode<synchronous>, transform_indices = @transform_7, window_bounds = array<i64: 256, 128>}, {pipeline_mode = #tpu.pipeline_mode<synchronous>, transform_indices = @transform_8, window_bounds = array<i64: 1, 128>}, {transform_indices = @transform_9, window_bounds = array<i64: 8, 128>}]} {
    %c0 = arith.constant 0 : index
    %c0_0 = arith.constant 0 : index
    %0 = vector.load %arg1[%c0, %c0_0] : memref<8x8xf32, #tpu.memory_space<vmem>>, vector<8x8xf32>
    %1 = arith.truncf %0 : vector<8x8xf32> to vector<8x8xbf16>
    %c0_1 = arith.constant 0 : index
    %c0_2 = arith.constant 0 : index
    %2 = vector.load %arg2[%c0_1, %c0_2] : memref<8x256xbf16, #tpu.memory_space<vmem>>, vector<8x256xbf16>
    %cst = arith.constant dense<0.000000e+00> : vector<8x256xf32>
    %3 = tpu.matmul %1, %2, %cst {dimension_numbers = #tpu.dot_dimension_numbers<[1], [0], [0], [1], [0, 0, 1, 1], [], []>} : vector<8x8xbf16>, vector<8x256xbf16>, vector<8x256xf32> -> vector<8x256xf32>
    %c0_3 = arith.constant 0 : index
    %c0_4 = arith.constant 0 : index
    %4 = vector.load %arg3[%c0_3, %c0_4] : memref<1x256xf32, #tpu.memory_space<vmem>>, vector<1x256xf32>
    %5 = vector.broadcast %4 : vector<1x256xf32> to vector<8x256xf32>
    %6 = arith.addf %3, %5 : vector<8x256xf32>
    %cst_5 = arith.constant 0.000000e+00 : f32
    %7 = vector.broadcast %cst_5 : f32 to vector<8x256xf32>
    %8 = arith.maximumf %6, %7 : vector<8x256xf32>
    %9 = arith.truncf %8 : vector<8x256xf32> to vector<8x256xbf16>
    %c0_6 = arith.constant 0 : index
    %c0_7 = arith.constant 0 : index
    %10 = vector.load %arg4[%c0_6, %c0_7] : memref<256x256xbf16, #tpu.memory_space<vmem>>, vector<256x256xbf16>
    %cst_8 = arith.constant dense<0.000000e+00> : vector<8x256xf32>
    %11 = tpu.matmul %9, %10, %cst_8 {dimension_numbers = #tpu.dot_dimension_numbers<[1], [0], [0], [1], [0, 0, 1, 1], [], []>} : vector<8x256xbf16>, vector<256x256xbf16>, vector<8x256xf32> -> vector<8x256xf32>
    %c0_9 = arith.constant 0 : index
    %c0_10 = arith.constant 0 : index
    %12 = vector.load %arg5[%c0_9, %c0_10] : memref<1x256xf32, #tpu.memory_space<vmem>>, vector<1x256xf32>
    %13 = vector.broadcast %12 : vector<1x256xf32> to vector<8x256xf32>
    %14 = arith.addf %11, %13 : vector<8x256xf32>
    %cst_11 = arith.constant 0.000000e+00 : f32
    %15 = vector.broadcast %cst_11 : f32 to vector<8x256xf32>
    %16 = arith.maximumf %14, %15 : vector<8x256xf32>
    %17 = arith.truncf %16 : vector<8x256xf32> to vector<8x256xbf16>
    %c0_12 = arith.constant 0 : index
    %c0_13 = arith.constant 0 : index
    %18 = vector.load %arg6[%c0_12, %c0_13] : memref<256x256xbf16, #tpu.memory_space<vmem>>, vector<256x256xbf16>
    %cst_14 = arith.constant dense<0.000000e+00> : vector<8x256xf32>
    %19 = tpu.matmul %17, %18, %cst_14 {dimension_numbers = #tpu.dot_dimension_numbers<[1], [0], [0], [1], [0, 0, 1, 1], [], []>} : vector<8x256xbf16>, vector<256x256xbf16>, vector<8x256xf32> -> vector<8x256xf32>
    %c0_15 = arith.constant 0 : index
    %c0_16 = arith.constant 0 : index
    %20 = vector.load %arg7[%c0_15, %c0_16] : memref<1x256xf32, #tpu.memory_space<vmem>>, vector<1x256xf32>
    %21 = vector.broadcast %20 : vector<1x256xf32> to vector<8x256xf32>
    %22 = arith.addf %19, %21 : vector<8x256xf32>
    %cst_17 = arith.constant 0.000000e+00 : f32
    %23 = vector.broadcast %cst_17 : f32 to vector<8x256xf32>
    %24 = arith.maximumf %22, %23 : vector<8x256xf32>
    %25 = arith.truncf %24 : vector<8x256xf32> to vector<8x256xbf16>
    %c0_18 = arith.constant 0 : index
    %c0_19 = arith.constant 0 : index
    %26 = vector.load %arg8[%c0_18, %c0_19] : memref<256x128xbf16, #tpu.memory_space<vmem>>, vector<256x128xbf16>
    %cst_20 = arith.constant dense<0.000000e+00> : vector<8x128xf32>
    %27 = tpu.matmul %25, %26, %cst_20 {dimension_numbers = #tpu.dot_dimension_numbers<[1], [0], [0], [1], [0, 0, 1, 1], [], []>} : vector<8x256xbf16>, vector<256x128xbf16>, vector<8x128xf32> -> vector<8x128xf32>
    %c0_21 = arith.constant 0 : index
    %c0_22 = arith.constant 0 : index
    %28 = vector.load %arg9[%c0_21, %c0_22] : memref<1x128xf32, #tpu.memory_space<vmem>>, vector<1x128xf32>
    %29 = vector.broadcast %28 : vector<1x128xf32> to vector<8x128xf32>
    %30 = arith.addf %27, %29 : vector<8x128xf32>
    %c0_23 = arith.constant 0 : index
    %c0_24 = arith.constant 0 : index
    %31 = vector.load %arg10[%c0_23, %c0_24] : memref<8x128xf32, #tpu.memory_space<vmem>>, vector<8x128xf32>
    tpu.vector_store %arg10[%c0_23, %c0_24], %30 {strides = array<i32>} : memref<8x128xf32, #tpu.memory_space<vmem>>, vector<8x128xf32>,
    return
  }
  func.func @transform_0(%arg0: i32) -> (i32, i32) {
    %c0_i32 = arith.constant 0 : i32
    %c0_i32_0 = arith.constant 0 : i32
    return %arg0, %c0_i32 : i32, i32
  }
  func.func @transform_1(%arg0: i32) -> (i32, i32) {
    %c0_i32 = arith.constant 0 : i32
    %c0_i32_0 = arith.constant 0 : i32
    %c0_i32_1 = arith.constant 0 : i32
    return %c0_i32, %c0_i32_0 : i32, i32
  }
  func.func @transform_2(%arg0: i32) -> (i32, i32) {
    %c0_i32 = arith.constant 0 : i32
    %c0_i32_0 = arith.constant 0 : i32
    %c0_i32_1 = arith.constant 0 : i32
    return %c0_i32, %c0_i32_0 : i32, i32
  }
  func.func @transform_3(%arg0: i32) -> (i32, i32) {
    %c0_i32 = arith.constant 0 : i32
    %c0_i32_0 = arith.constant 0 : i32
    %c0_i32_1 = arith.constant 0 : i32
    return %c0_i32, %c0_i32_0 : i32, i32
  }
  func.func @transform_4(%arg0: i32) -> (i32, i32) {
    %c0_i32 = arith.constant 0 : i32
    %c0_i32_0 = arith.constant 0 : i32
    %c0_i32_1 = arith.constant 0 : i32
    return %c0_i32, %c0_i32_0 : i32, i32
  }
  func.func @transform_5(%arg0: i32) -> (i32, i32) {
    %c0_i32 = arith.constant 0 : i32
    %c0_i32_0 = arith.constant 0 : i32
    %c0_i32_1 = arith.constant 0 : i32
    return %c0_i32, %c0_i32_0 : i32, i32
  }
  func.func @transform_6(%arg0: i32) -> (i32, i32) {
    %c0_i32 = arith.constant 0 : i32
    %c0_i32_0 = arith.constant 0 : i32
    %c0_i32_1 = arith.constant 0 : i32
    return %c0_i32, %c0_i32_0 : i32, i32
  }
  func.func @transform_7(%arg0: i32) -> (i32, i32) {
    %c0_i32 = arith.constant 0 : i32
    %c0_i32_0 = arith.constant 0 : i32
    %c0_i32_1 = arith.constant 0 : i32
    return %c0_i32, %c0_i32_0 : i32, i32
  }
  func.func @transform_8(%arg0: i32) -> (i32, i32) {
    %c0_i32 = arith.constant 0 : i32
    %c0_i32_0 = arith.constant 0 : i32
    %c0_i32_1 = arith.constant 0 : i32
    return %c0_i32, %c0_i32_0 : i32, i32
  }
  func.func @transform_9(%arg0: i32) -> (i32, i32) {
    %c0_i32 = arith.constant 0 : i32
    %c0_i32_0 = arith.constant 0 : i32
    return %arg0, %c0_i32 : i32, i32
  }
}

</mosaic_0001>

<llo_original>
// kernel: tpu_custom_call.1
$region0: #{tpu_custom_call.1}
  #allocation0 [shape = 'u32[]', space=smem, size = 0x4, offset = 0x4, fixed_abs, tag = 'smem constant byte address 0x4 - core index']
  #allocation1 [shape = 'u32[144,128]{1,0:T(1,128)}', space=vmem, size = 0x12000, scoped, tag = 'internal scratch']
  %s0 = inlined_call_operand.hbm [shape: f32[8,8], index: 0, kind: input, shape index: {}]
  %s1 = inlined_call_operand.hbm [shape: bf16[8,256], index: 1, kind: input, shape index: {}]
  %s2 = inlined_call_operand.vmem [shape: f32[1,256], index: 2, kind: input, shape index: {}]
  %s3 = inlined_call_operand.hbm [shape: bf16[256,256], index: 3, kind: input, shape index: {}]
  %s4 = inlined_call_operand.vmem [shape: f32[1,256], index: 4, kind: input, shape index: {}]
  %s5 = inlined_call_operand.hbm [shape: bf16[256,256], index: 5, kind: input, shape index: {}]
  %s6 = inlined_call_operand.vmem [shape: f32[1,256], index: 6, kind: input, shape index: {}]
  %s7 = inlined_call_operand.hbm [shape: bf16[256,128], index: 7, kind: input, shape index: {}]
  %s8 = inlined_call_operand.vmem [shape: f32[1,128], index: 8, kind: input, shape index: {}]
  %s9 = inlined_call_operand.hbm [shape: f32[8,128], index: 9, kind: output, shape index: {}]
  %s10 = sld [smem:[#allocation0]]
  $region66: #{tpu_custom_call.1} parent=0
    _
  %s12 = ssub.s32 1, %s10
  %s13 = scalar_select 0, %s12, %s10
  $region1: #{tpu_custom_call.1} parent=0
    #allocation2 [shape = 'u8[4096]{0}', space=vmem, size = 0x1000, scoped, tag = 'input window, operand 0, single buffered']
    #allocation3 [shape = 's32[1]{0}', space=sflag, size = 0x4, scoped, tag = 'scoped memory for tpu_custom_call.1']
    #allocation4 [shape = 's32[1]{0}', space=sflag, size = 0x4, scoped, tag = 'scoped memory for tpu_custom_call.1']
    #allocation5 [shape = 'u8[4096]{0}', space=vmem, size = 0x1000, scoped, tag = 'input window, operand 1, single buffered']
    #allocation6 [shape = 's32[1]{0}', space=sflag, size = 0x4, scoped, tag = 'scoped memory for tpu_custom_call.1']
    #allocation7 [shape = 'u8[131072]{0}', space=vmem, size = 0x20000, scoped, tag = 'input window, operand 3, single buffered']
    #allocation8 [shape = 'u8[131072]{0}', space=vmem, size = 0x20000, scoped, tag = 'input window, operand 5, single buffered']
    #allocation9 [shape = 's32[1]{0}', space=sflag, size = 0x4, scoped, tag = 'scoped memory for tpu_custom_call.1']
    #allocation10 [shape = 'u8[65536]{0}', space=vmem, size = 0x10000, scoped, tag = 'input window, operand 7, single buffered']
    #allocation11 [shape = 'u8[4096]{0}', space=vmem, size = 0x1000, scoped, tag = 'output window, operand 0, single buffered']
    %14 = vsyncpa [#allocation3], 0
    %15 = vsyncpa [#allocation6], 0
    %16 = vsyncpa [#allocation9], 0
    %17 = vsyncpa [#allocation4], 0
    // Predicated region
    $region2: #{tpu_custom_call.1} parent=1 // pred_check
      _
    $region3: #{tpu_custom_call.1} parent=1 // pred_check_branch
      %19 = sbr.rel (0) target = $region5
    $region4: #{tpu_custom_call.1} parent=1 // pred_region
      %s21 = ssub.s32 128, 128
      %22 = vsyncadd [#allocation3], %s21
      %s24 = sshll.u32 [#allocation2], 4
      %s25 = int_to_ptr.vmem [resolvable:$true] %s24
      %27 = dma.hbm_to_vmem [thread:$0]  %s0, 128, %s25, [#allocation3]
    $region5: #{tpu_custom_call.1} parent=1 // pred_fallthru
      _
    // Predicated region
    $region6: #{tpu_custom_call.1} parent=1 // pred_check
      _
    $region7: #{tpu_custom_call.1} parent=1 // pred_check_branch
      %29 = sbr.rel (0) target = $region9
    $region8: #{tpu_custom_call.1} parent=1 // pred_region
      %s31 = ssub.s32 128, 128
      %32 = vsyncadd [#allocation6], %s31
      %s34 = sshll.u32 [#allocation5], 4
      %s35 = int_to_ptr.vmem [resolvable:$true] %s34
      %37 = dma.hbm_to_vmem [thread:$0]  %s1, 128, %s35, [#allocation6]
    $region9: #{tpu_custom_call.1} parent=1 // pred_fallthru
      _
    // Predicated region
    $region10: #{tpu_custom_call.1} parent=1 // pred_check
      _
    $region11: #{tpu_custom_call.1} parent=1 // pred_check_branch
      %39 = sbr.rel (0) target = $region13
    $region12: #{tpu_custom_call.1} parent=1 // pred_region
      _
    $region13: #{tpu_custom_call.1} parent=1 // pred_fallthru
      _
    // Predicated region
    $region14: #{tpu_custom_call.1} parent=1 // pred_check
      _
    $region15: #{tpu_custom_call.1} parent=1 // pred_check_branch
      %41 = sbr.rel (0) target = $region17
    $region16: #{tpu_custom_call.1} parent=1 // pred_region
      %s43 = ssub.s32 4096, 4096
      %44 = vsyncadd [#allocation6], %s43
      %s45 = sshll.u32 [#allocation7], 4
      %s46 = int_to_ptr.vmem [resolvable:$true] %s45
      %51 = dma.hbm_to_vmem [thread:$0]  %s3, 4096, %s46, [#allocation6], 128, 128, 8
    $region17: #{tpu_custom_call.1} parent=1 // pred_fallthru
      _
    // Predicated region
    $region18: #{tpu_custom_call.1} parent=1 // pred_check
      _
    $region19: #{tpu_custom_call.1} parent=1 // pred_check_branch
      %53 = sbr.rel (0) target = $region21
    $region20: #{tpu_custom_call.1} parent=1 // pred_region
      _
    $region21: #{tpu_custom_call.1} parent=1 // pred_fallthru
      _
    // Predicated region
    $region22: #{tpu_custom_call.1} parent=1 // pred_check
      _
    $region23: #{tpu_custom_call.1} parent=1 // pred_check_branch
      %55 = sbr.rel (0) target = $region25
    $region24: #{tpu_custom_call.1} parent=1 // pred_region
      %s57 = ssub.s32 4096, 4096
      %58 = vsyncadd [#allocation9], %s57
      %s59 = sshll.u32 [#allocation8], 4
      %s60 = int_to_ptr.vmem [resolvable:$true] %s59
      %65 = dma.hbm_to_vmem [thread:$0]  %s5, 4096, %s60, [#allocation9], 128, 128, 8
    $region25: #{tpu_custom_call.1} parent=1 // pred_fallthru
      _
    // Predicated region
    $region26: #{tpu_custom_call.1} parent=1 // pred_check
      _
    $region27: #{tpu_custom_call.1} parent=1 // pred_check_branch
      %67 = sbr.rel (0) target = $region29
    $region28: #{tpu_custom_call.1} parent=1 // pred_region
      _
    $region29: #{tpu_custom_call.1} parent=1 // pred_fallthru
      _
    // Predicated region
    $region30: #{tpu_custom_call.1} parent=1 // pred_check
      _
    $region31: #{tpu_custom_call.1} parent=1 // pred_check_branch
      %69 = sbr.rel (0) target = $region33
    $region32: #{tpu_custom_call.1} parent=1 // pred_region
      %s71 = ssub.s32 2048, 2048
      %72 = vsyncadd [#allocation9], %s71
      %s73 = sshll.u32 [#allocation10], 4
      %s74 = int_to_ptr.vmem [resolvable:$true] %s73
      %79 = dma.hbm_to_vmem [thread:$0]  %s7, 2048, %s74, [#allocation9], 64, 64, 4
    $region33: #{tpu_custom_call.1} parent=1 // pred_fallthru
      _
    // Predicated region
    $region34: #{tpu_custom_call.1} parent=1 // pred_check
      _
    $region35: #{tpu_custom_call.1} parent=1 // pred_check_branch
      %81 = sbr.rel (0) target = $region37
    $region36: #{tpu_custom_call.1} parent=1 // pred_region
      _
    $region37: #{tpu_custom_call.1} parent=1 // pred_fallthru
      _
    // Predicated region
    $region38: #{tpu_custom_call.1} parent=1 // pred_check
      _
    $region39: #{tpu_custom_call.1} parent=1 // pred_check_branch
      %83 = sbr.rel (0) target = $region41
    $region40: #{tpu_custom_call.1} parent=1 // pred_region
      %84 = dma.done [#allocation3], 128
    $region41: #{tpu_custom_call.1} parent=1 // pred_fallthru
      _
    // Predicated region
    $region42: #{tpu_custom_call.1} parent=1 // pred_check
      _
    $region43: #{tpu_custom_call.1} parent=1 // pred_check_branch
      %86 = sbr.rel (0) target = $region45
    $region44: #{tpu_custom_call.1} parent=1 // pred_region
      %87 = dma.done [#allocation6], 128
    $region45: #{tpu_custom_call.1} parent=1 // pred_fallthru
      _
    // Predicated region
    $region46: #{tpu_custom_call.1} parent=1 // pred_check
      _
    $region47: #{tpu_custom_call.1} parent=1 // pred_check_branch
      %89 = sbr.rel (0) target = $region49
    $region48: #{tpu_custom_call.1} parent=1 // pred_region
      %90 = dma.done [#allocation6], 4096
    $region49: #{tpu_custom_call.1} parent=1 // pred_fallthru
      _
    // Predicated region
    $region50: #{tpu_custom_call.1} parent=1 // pred_check
      _
    $region51: #{tpu_custom_call.1} parent=1 // pred_check_branch
      %92 = sbr.rel (0) target = $region53
    $region52: #{tpu_custom_call.1} parent=1 // pred_region
      %93 = dma.done [#allocation9], 4096
    $region53: #{tpu_custom_call.1} parent=1 // pred_fallthru
      _
    // Predicated region
    $region54: #{tpu_custom_call.1} parent=1 // pred_check
      _
    $region55: #{tpu_custom_call.1} parent=1 // pred_check_branch
      %95 = sbr.rel (0) target = $region57
    $region56: #{tpu_custom_call.1} parent=1 // pred_region
      %96 = dma.done [#allocation9], 2048
    $region57: #{tpu_custom_call.1} parent=1 // pred_fallthru
      _
    %v98 = vld [vmem:[#allocation2] sm:$0xff]
    %v99 = vpack.c.bf16 %v98, %v98
    %v100 = vld [vmem:[#allocation5] sm:$0xff]
    %v101 = vld [vmem:[%s2] sm:$0x3]
    %v103 = vlaneseq
    %v104 = vshrl.u32 %v103, 7
    %v105 = vsub.s32 0, %v104
    %v106 = vrot.slane %v101, %v105
    %v107 = vlaneseq
    %v108 = vshrl.u32 %v107, 7
    %v109 = vsub.s32 1, %v108
    %v110 = vrot.slane %v101, %v109
    %v114 = vunpack.c.l.b16 %v100
    %v115 = vunpack.c.h.b16 %v100
    %v116 = vpack.c.b16 %v114, %v114
    %v117 = vpack.c.b16 %v115, %v115
    %vm118 = vcmask 64512
    %v120 = vsel %vm118, %v99, 0
    %vm122 = vcmask 1043456
    %v124 = vsel %vm122, %v116, 0
    %v127 = vsel %vm122, %v117, 0
    %129 = vmatprep.subr.bf16.mxu0 %v127
    %130 = vmatpush1.bf16.msra.mxu0 %v124
    %131 = vmatprep.subr.bf16.mxu0 0
    %132 = vmatpush1.bf16.msra.mxu0 0
    %133 = vmatprep.subr.bf16.mxu0 0
    %134 = vmatpush1.bf16.msra.mxu0 0
    %135 = vmatprep.subr.bf16.mxu0 0
    %136 = vmatpush1.bf16.msra.mxu0 0
    %137 = vmatprep.subr.bf16.mxu0 0
    %138 = vmatpush1.bf16.msra.mxu0 0
    %139 = vmatprep.subr.bf16.mxu0 0
    %140 = vmatpush1.bf16.msra.mxu0 0
    %141 = vmatprep.subr.bf16.mxu0 0
    %142 = vmatpush1.bf16.msra.mxu0 0
    %143 = vmatprep.subr.bf16.mxu0 0
    %144 = vmatpush1.bf16.msra.mxu0 0
    %145 = vmatprep.subr.bf16.mxu0 0
    %146 = vmatpush1.bf16.msra.mxu0 0
    %147 = vmatprep.subr.bf16.mxu0 0
    %148 = vmatpush1.bf16.msra.mxu0 0
    %149 = vmatprep.subr.bf16.mxu0 0
    %150 = vmatpush1.bf16.msra.mxu0 0
    %151 = vmatprep.subr.bf16.mxu0 0
    %152 = vmatpush1.bf16.msra.mxu0 0
    %153 = vmatprep.subr.bf16.mxu0 0
    %154 = vmatpush1.bf16.msra.mxu0 0
    %155 = vmatprep.subr.bf16.mxu0 0
    %156 = vmatpush1.bf16.msra.mxu0 0
    %157 = vmatprep.subr.bf16.mxu0 0
    %158 = vmatpush1.bf16.msra.mxu0 0
    %159 = vmatprep.subr.bf16.mxu0 0
    %160 = vmatpush1.bf16.msra.mxu0 0
    %161 = vmatprep.mubr.bf16.mxu0 0
    %162 = vmatmul.mubr.bf16.gmra.mrb[0].mxu0 %v120
    %v163 = vpop.f32.mrb[0].mxu0
    %v164 = vadd.f32 %v106, %v163
    %v165 = vpop.f32.mrb[0].mxu0
    %v166 = vadd.f32 %v110, %v165
    %v167 = vpop.f32.mrb[0].mxu0
    %v168 = vpop.f32.mrb[0].mxu0
    %169 = vdwg.mxu0
    %v170 = vmax.f32 %v164, 0.0
    %v171 = vmax.f32 %v166, 0.0
    %v172 = vpack.c.bf16 %v170, %v170
    %v173 = vpack.c.bf16 %v171, %v171
    %v174 = vld [vmem:[#allocation7] sm:$0xff]
    %v175 = vld [vmem:[#allocation7 + $0x8] sm:$0xff]
    %v176 = vld [vmem:[#allocation7 + $0x10] sm:$0xff]
    %v177 = vld [vmem:[#allocation7 + $0x18] sm:$0xff]
    %v178 = vld [vmem:[#allocation7 + $0x20] sm:$0xff]
    %v179 = vld [vmem:[#allocation7 + $0x28] sm:$0xff]
    %v180 = vld [vmem:[#allocation7 + $0x30] sm:$0xff]
    %v181 = vld [vmem:[#allocation7 + $0x38] sm:$0xff]
    %v182 = vld [vmem:[#allocation7 + $0x40] sm:$0xff]
    %v183 = vld [vmem:[#allocation7 + $0x48] sm:$0xff]
    %v184 = vld [vmem:[#allocation7 + $0x50] sm:$0xff]
    %v185 = vld [vmem:[#allocation7 + $0x58] sm:$0xff]
    %v186 = vld [vmem:[#allocation7 + $0x60] sm:$0xff]
    %v187 = vld [vmem:[#allocation7 + $0x68] sm:$0xff]
    %v188 = vld [vmem:[#allocation7 + $0x70] sm:$0xff]
    %v189 = vld [vmem:[#allocation7 + $0x78] sm:$0xff]
    %v190 = vld [vmem:[#allocation7 + $0x80] sm:$0xff]
    %v191 = vld [vmem:[#allocation7 + $0x88] sm:$0xff]
    %v192 = vld [vmem:[#allocation7 + $0x90] sm:$0xff]
    %v193 = vld [vmem:[#allocation7 + $0x98] sm:$0xff]
    %v194 = vld [vmem:[#allocation7 + $0xa0] sm:$0xff]
    %v195 = vld [vmem:[#allocation7 + $0xa8] sm:$0xff]
    %v196 = vld [vmem:[#allocation7 + $0xb0] sm:$0xff]
    %v197 = vld [vmem:[#allocation7 + $0xb8] sm:$0xff]
    %v198 = vld [vmem:[#allocation7 + $0xc0] sm:$0xff]
    %v199 = vld [vmem:[#allocation7 + $0xc8] sm:$0xff]
    %v200 = vld [vmem:[#allocation7 + $0xd0] sm:$0xff]
    %v201 = vld [vmem:[#allocation7 + $0xd8] sm:$0xff]
    %v202 = vld [vmem:[#allocation7 + $0xe0] sm:$0xff]
    %v203 = vld [vmem:[#allocation7 + $0xe8] sm:$0xff]
    %v204 = vld [vmem:[#allocation7 + $0xf0] sm:$0xff]
    %v205 = vld [vmem:[#allocation7 + $0xf8] sm:$0xff]
    %v206 = vld [vmem:[%s4] sm:$0x3]
    %v208 = vlaneseq
    %v209 = vshrl.u32 %v208, 7
    %v210 = vsub.s32 0, %v209
    %v211 = vrot.slane %v206, %v210
    %v212 = vlaneseq
    %v213 = vshrl.u32 %v212, 7
    %v214 = vsub.s32 1, %v213
    %v215 = vrot.slane %v206, %v214
    %v250 = vunpack.c.l.b16 %v174
    %v251 = vunpack.c.h.b16 %v174
    %v252 = vunpack.c.l.b16 %v175
    %v253 = vunpack.c.h.b16 %v175
    %v254 = vunpack.c.l.b16 %v176
    %v255 = vunpack.c.h.b16 %v176
    %v256 = vunpack.c.l.b16 %v177
    %v257 = vunpack.c.h.b16 %v177
    %v258 = vunpack.c.l.b16 %v178
    %v259 = vunpack.c.h.b16 %v178
    %v260 = vunpack.c.l.b16 %v179
    %v261 = vunpack.c.h.b16 %v179
    %v262 = vunpack.c.l.b16 %v180
    %v263 = vunpack.c.h.b16 %v180
    %v264 = vunpack.c.l.b16 %v181
    %v265 = vunpack.c.h.b16 %v181
    %v266 = vunpack.c.l.b16 %v182
    %v267 = vunpack.c.h.b16 %v182
    %v268 = vunpack.c.l.b16 %v183
    %v269 = vunpack.c.h.b16 %v183
    %v270 = vunpack.c.l.b16 %v184
    %v271 = vunpack.c.h.b16 %v184
    %v272 = vunpack.c.l.b16 %v185
    %v273 = vunpack.c.h.b16 %v185
    %v274 = vunpack.c.l.b16 %v186
    %v275 = vunpack.c.h.b16 %v186
    %v276 = vunpack.c.l.b16 %v187
    %v277 = vunpack.c.h.b16 %v187
    %v278 = vunpack.c.l.b16 %v188
    %v279 = vunpack.c.h.b16 %v188
    %v280 = vunpack.c.l.b16 %v189
    %v281 = vunpack.c.h.b16 %v189
    %v282 = vunpack.c.l.b16 %v190
    %v283 = vunpack.c.h.b16 %v190
    %v284 = vunpack.c.l.b16 %v191
    %v285 = vunpack.c.h.b16 %v191
    %v286 = vunpack.c.l.b16 %v192
    %v287 = vunpack.c.h.b16 %v192
    %v288 = vunpack.c.l.b16 %v193
    %v289 = vunpack.c.h.b16 %v193
    %v290 = vunpack.c.l.b16 %v194
    %v291 = vunpack.c.h.b16 %v194
    %v292 = vunpack.c.l.b16 %v195
    %v293 = vunpack.c.h.b16 %v195
    %v294 = vunpack.c.l.b16 %v196
    %v295 = vunpack.c.h.b16 %v196
    %v296 = vunpack.c.l.b16 %v197
    %v297 = vunpack.c.h.b16 %v197
    %v298 = vunpack.c.l.b16 %v198
    %v299 = vunpack.c.h.b16 %v198
    %v300 = vunpack.c.l.b16 %v199
    %v301 = vunpack.c.h.b16 %v199
    %v302 = vunpack.c.l.b16 %v200
    %v303 = vunpack.c.h.b16 %v200
    %v304 = vunpack.c.l.b16 %v201
    %v305 = vunpack.c.h.b16 %v201
    %v306 = vunpack.c.l.b16 %v202
    %v307 = vunpack.c.h.b16 %v202
    %v308 = vunpack.c.l.b16 %v203
    %v309 = vunpack.c.h.b16 %v203
    %v310 = vunpack.c.l.b16 %v204
    %v311 = vunpack.c.h.b16 %v204
    %v312 = vunpack.c.l.b16 %v205
    %v313 = vunpack.c.h.b16 %v205
    %v314 = vpack.c.b16 %v252, %v250
    %v315 = vpack.c.b16 %v253, %v251
    %v316 = vpack.c.b16 %v256, %v254
    %v317 = vpack.c.b16 %v257, %v255
    %v318 = vpack.c.b16 %v260, %v258
    %v319 = vpack.c.b16 %v261, %v259
    %v320 = vpack.c.b16 %v264, %v262
    %v321 = vpack.c.b16 %v265, %v263
    %v322 = vpack.c.b16 %v268, %v266
    %v323 = vpack.c.b16 %v269, %v267
    %v324 = vpack.c.b16 %v272, %v270
    %v325 = vpack.c.b16 %v273, %v271
    %v326 = vpack.c.b16 %v276, %v274
    %v327 = vpack.c.b16 %v277, %v275
    %v328 = vpack.c.b16 %v280, %v278
    %v329 = vpack.c.b16 %v281, %v279
    %v330 = vpack.c.b16 %v284, %v282
    %v331 = vpack.c.b16 %v285, %v283
    %v332 = vpack.c.b16 %v288, %v286
    %v333 = vpack.c.b16 %v289, %v287
    %v334 = vpack.c.b16 %v292, %v290
    %v335 = vpack.c.b16 %v293, %v291
    %v336 = vpack.c.b16 %v296, %v294
    %v337 = vpack.c.b16 %v297, %v295
    %v338 = vpack.c.b16 %v300, %v298
    %v339 = vpack.c.b16 %v301, %v299
    %v340 = vpack.c.b16 %v304, %v302
    %v341 = vpack.c.b16 %v305, %v303
    %v342 = vpack.c.b16 %v308, %v306
    %v343 = vpack.c.b16 %v309, %v307
    %v344 = vpack.c.b16 %v312, %v310
    %v345 = vpack.c.b16 %v313, %v311
    %378 = vmatprep.subr.bf16.mxu0 %v315
    %379 = vmatpush1.bf16.msra.mxu0 %v314
    %380 = vmatprep.subr.bf16.mxu0 %v317
    %381 = vmatpush1.bf16.msra.mxu0 %v316
    %382 = vmatprep.subr.bf16.mxu0 %v319
    %383 = vmatpush1.bf16.msra.mxu0 %v318
    %384 = vmatprep.subr.bf16.mxu0 %v321
    %385 = vmatpush1.bf16.msra.mxu0 %v320
    %386 = vmatprep.subr.bf16.mxu0 %v323
    %387 = vmatpush1.bf16.msra.mxu0 %v322
    %388 = vmatprep.subr.bf16.mxu0 %v325
    %389 = vmatpush1.bf16.msra.mxu0 %v324
    %390 = vmatprep.subr.bf16.mxu0 %v327
    %391 = vmatpush1.bf16.msra.mxu0 %v326
    %392 = vmatprep.subr.bf16.mxu0 %v329
    %393 = vmatpush1.bf16.msra.mxu0 %v328
    %394 = vmatprep.subr.bf16.mxu0 %v331
    %395 = vmatpush1.bf16.msra.mxu0 %v330
    %396 = vmatprep.subr.bf16.mxu0 %v333
    %397 = vmatpush1.bf16.msra.mxu0 %v332
    %398 = vmatprep.subr.bf16.mxu0 %v335
    %399 = vmatpush1.bf16.msra.mxu0 %v334
    %400 = vmatprep.subr.bf16.mxu0 %v337
    %401 = vmatpush1.bf16.msra.mxu0 %v336
    %402 = vmatprep.subr.bf16.mxu0 %v339
    %403 = vmatpush1.bf16.msra.mxu0 %v338
    %404 = vmatprep.subr.bf16.mxu0 %v341
    %405 = vmatpush1.bf16.msra.mxu0 %v340
    %406 = vmatprep.subr.bf16.mxu0 %v343
    %407 = vmatpush1.bf16.msra.mxu0 %v342
    %408 = vmatprep.subr.bf16.mxu0 %v345
    %409 = vmatpush1.bf16.msra.mxu0 %v344
    %410 = vmatprep.mubr.bf16.mxu0 %v173
    %411 = vmatmul.mubr.bf16.gmra.mrb[0].mxu0 %v172
    %v412 = vpop.f32.mrb[0].mxu0
    %v413 = vadd.f32 %v211, %v412
    %v414 = vpop.f32.mrb[0].mxu0
    %v415 = vadd.f32 %v215, %v414
    %v416 = vpop.f32.mrb[0].mxu0
    %v417 = vpop.f32.mrb[0].mxu0
    %418 = vdwg.mxu0
    %v419 = vmax.f32 %v413, 0.0
    %v420 = vmax.f32 %v415, 0.0
    %v421 = vpack.c.bf16 %v419, %v419
    %v422 = vpack.c.bf16 %v420, %v420
    %v423 = vld [vmem:[#allocation8] sm:$0xff]
    %v424 = vld [vmem:[#allocation8 + $0x8] sm:$0xff]
    %v425 = vld [vmem:[#allocation8 + $0x10] sm:$0xff]
    %v426 = vld [vmem:[#allocation8 + $0x18] sm:$0xff]
    %v427 = vld [vmem:[#allocation8 + $0x20] sm:$0xff]
    %v428 = vld [vmem:[#allocation8 + $0x28] sm:$0xff]
    %v429 = vld [vmem:[#allocation8 + $0x30] sm:$0xff]
    %v430 = vld [vmem:[#allocation8 + $0x38] sm:$0xff]
    %v431 = vld [vmem:[#allocation8 + $0x40] sm:$0xff]
    %v432 = vld [vmem:[#allocation8 + $0x48] sm:$0xff]
    %v433 = vld [vmem:[#allocation8 + $0x50] sm:$0xff]
    %v434 = vld [vmem:[#allocation8 + $0x58] sm:$0xff]
    %v435 = vld [vmem:[#allocation8 + $0x60] sm:$0xff]
    %v436 = vld [vmem:[#allocation8 + $0x68] sm:$0xff]
    %v437 = vld [vmem:[#allocation8 + $0x70] sm:$0xff]
    %v438 = vld [vmem:[#allocation8 + $0x78] sm:$0xff]
    %v439 = vld [vmem:[#allocation8 + $0x80] sm:$0xff]
    %v440 = vld [vmem:[#allocation8 + $0x88] sm:$0xff]
    %v441 = vld [vmem:[#allocation8 + $0x90] sm:$0xff]
    %v442 = vld [vmem:[#allocation8 + $0x98] sm:$0xff]
    %v443 = vld [vmem:[#allocation8 + $0xa0] sm:$0xff]
    %v444 = vld [vmem:[#allocation8 + $0xa8] sm:$0xff]
    %v445 = vld [vmem:[#allocation8 + $0xb0] sm:$0xff]
    %v446 = vld [vmem:[#allocation8 + $0xb8] sm:$0xff]
    %v447 = vld [vmem:[#allocation8 + $0xc0] sm:$0xff]
    %v448 = vld [vmem:[#allocation8 + $0xc8] sm:$0xff]
    %v449 = vld [vmem:[#allocation8 + $0xd0] sm:$0xff]
    %v450 = vld [vmem:[#allocation8 + $0xd8] sm:$0xff]
    %v451 = vld [vmem:[#allocation8 + $0xe0] sm:$0xff]
    %v452 = vld [vmem:[#allocation8 + $0xe8] sm:$0xff]
    %v453 = vld [vmem:[#allocation8 + $0xf0] sm:$0xff]
    %v454 = vld [vmem:[#allocation8 + $0xf8] sm:$0xff]
    %v455 = vld [vmem:[%s6] sm:$0x3]
    %v457 = vlaneseq
    %v458 = vshrl.u32 %v457, 7
    %v459 = vsub.s32 0, %v458
    %v460 = vrot.slane %v455, %v459
    %v461 = vlaneseq
    %v462 = vshrl.u32 %v461, 7
    %v463 = vsub.s32 1, %v462
    %v464 = vrot.slane %v455, %v463
    %v499 = vunpack.c.l.b16 %v423
    %v500 = vunpack.c.h.b16 %v423
    %v501 = vunpack.c.l.b16 %v424
    %v502 = vunpack.c.h.b16 %v424
    %v503 = vunpack.c.l.b16 %v425
    %v504 = vunpack.c.h.b16 %v425
    %v505 = vunpack.c.l.b16 %v426
    %v506 = vunpack.c.h.b16 %v426
    %v507 = vunpack.c.l.b16 %v427
    %v508 = vunpack.c.h.b16 %v427
    %v509 = vunpack.c.l.b16 %v428
    %v510 = vunpack.c.h.b16 %v428
    %v511 = vunpack.c.l.b16 %v429
    %v512 = vunpack.c.h.b16 %v429
    %v513 = vunpack.c.l.b16 %v430
    %v514 = vunpack.c.h.b16 %v430
    %v515 = vunpack.c.l.b16 %v431
    %v516 = vunpack.c.h.b16 %v431
    %v517 = vunpack.c.l.b16 %v432
    %v518 = vunpack.c.h.b16 %v432
    %v519 = vunpack.c.l.b16 %v433
    %v520 = vunpack.c.h.b16 %v433
    %v521 = vunpack.c.l.b16 %v434
    %v522 = vunpack.c.h.b16 %v434
    %v523 = vunpack.c.l.b16 %v435
    %v524 = vunpack.c.h.b16 %v435
    %v525 = vunpack.c.l.b16 %v436
    %v526 = vunpack.c.h.b16 %v436
    %v527 = vunpack.c.l.b16 %v437
    %v528 = vunpack.c.h.b16 %v437
    %v529 = vunpack.c.l.b16 %v438
    %v530 = vunpack.c.h.b16 %v438
    %v531 = vunpack.c.l.b16 %v439
    %v532 = vunpack.c.h.b16 %v439
    %v533 = vunpack.c.l.b16 %v440
    %v534 = vunpack.c.h.b16 %v440
    %v535 = vunpack.c.l.b16 %v441
    %v536 = vunpack.c.h.b16 %v441
    %v537 = vunpack.c.l.b16 %v442
    %v538 = vunpack.c.h.b16 %v442
    %v539 = vunpack.c.l.b16 %v443
    %v540 = vunpack.c.h.b16 %v443
    %v541 = vunpack.c.l.b16 %v444
    %v542 = vunpack.c.h.b16 %v444
    %v543 = vunpack.c.l.b16 %v445
    %v544 = vunpack.c.h.b16 %v445
    %v545 = vunpack.c.l.b16 %v446
    %v546 = vunpack.c.h.b16 %v446
    %v547 = vunpack.c.l.b16 %v447
    %v548 = vunpack.c.h.b16 %v447
    %v549 = vunpack.c.l.b16 %v448
    %v550 = vunpack.c.h.b16 %v448
    %v551 = vunpack.c.l.b16 %v449
    %v552 = vunpack.c.h.b16 %v449
    %v553 = vunpack.c.l.b16 %v450
    %v554 = vunpack.c.h.b16 %v450
    %v555 = vunpack.c.l.b16 %v451
    %v556 = vunpack.c.h.b16 %v451
    %v557 = vunpack.c.l.b16 %v452
    %v558 = vunpack.c.h.b16 %v452
    %v559 = vunpack.c.l.b16 %v453
    %v560 = vunpack.c.h.b16 %v453
    %v561 = vunpack.c.l.b16 %v454
    %v562 = vunpack.c.h.b16 %v454
    %v563 = vpack.c.b16 %v501, %v499
    %v564 = vpack.c.b16 %v502, %v500
    %v565 = vpack.c.b16 %v505, %v503
    %v566 = vpack.c.b16 %v506, %v504
    %v567 = vpack.c.b16 %v509, %v507
    %v568 = vpack.c.b16 %v510, %v508
    %v569 = vpack.c.b16 %v513, %v511
    %v570 = vpack.c.b16 %v514, %v512
    %v571 = vpack.c.b16 %v517, %v515
    %v572 = vpack.c.b16 %v518, %v516
    %v573 = vpack.c.b16 %v521, %v519
    %v574 = vpack.c.b16 %v522, %v520
    %v575 = vpack.c.b16 %v525, %v523
    %v576 = vpack.c.b16 %v526, %v524
    %v577 = vpack.c.b16 %v529, %v527
    %v578 = vpack.c.b16 %v530, %v528
    %v579 = vpack.c.b16 %v533, %v531
    %v580 = vpack.c.b16 %v534, %v532
    %v581 = vpack.c.b16 %v537, %v535
    %v582 = vpack.c.b16 %v538, %v536
    %v583 = vpack.c.b16 %v541, %v539
    %v584 = vpack.c.b16 %v542, %v540
    %v585 = vpack.c.b16 %v545, %v543
    %v586 = vpack.c.b16 %v546, %v544
    %v587 = vpack.c.b16 %v549, %v547
    %v588 = vpack.c.b16 %v550, %v548
    %v589 = vpack.c.b16 %v553, %v551
    %v590 = vpack.c.b16 %v554, %v552
    %v591 = vpack.c.b16 %v557, %v555
    %v592 = vpack.c.b16 %v558, %v556
    %v593 = vpack.c.b16 %v561, %v559
    %v594 = vpack.c.b16 %v562, %v560
    %627 = vmatprep.subr.bf16.mxu0 %v564
    %628 = vmatpush1.bf16.msra.mxu0 %v563
    %629 = vmatprep.subr.bf16.mxu0 %v566
    %630 = vmatpush1.bf16.msra.mxu0 %v565
    %631 = vmatprep.subr.bf16.mxu0 %v568
    %632 = vmatpush1.bf16.msra.mxu0 %v567
    %633 = vmatprep.subr.bf16.mxu0 %v570
    %634 = vmatpush1.bf16.msra.mxu0 %v569
    %635 = vmatprep.subr.bf16.mxu0 %v572
    %636 = vmatpush1.bf16.msra.mxu0 %v571
    %637 = vmatprep.subr.bf16.mxu0 %v574
    %638 = vmatpush1.bf16.msra.mxu0 %v573
    %639 = vmatprep.subr.bf16.mxu0 %v576
    %640 = vmatpush1.bf16.msra.mxu0 %v575
    %641 = vmatprep.subr.bf16.mxu0 %v578
    %642 = vmatpush1.bf16.msra.mxu0 %v577
    %643 = vmatprep.subr.bf16.mxu0 %v580
    %644 = vmatpush1.bf16.msra.mxu0 %v579
    %645 = vmatprep.subr.bf16.mxu0 %v582
    %646 = vmatpush1.bf16.msra.mxu0 %v581
    %647 = vmatprep.subr.bf16.mxu0 %v584
    %648 = vmatpush1.bf16.msra.mxu0 %v583
    %649 = vmatprep.subr.bf16.mxu0 %v586
    %650 = vmatpush1.bf16.msra.mxu0 %v585
    %651 = vmatprep.subr.bf16.mxu0 %v588
    %652 = vmatpush1.bf16.msra.mxu0 %v587
    %653 = vmatprep.subr.bf16.mxu0 %v590
    %654 = vmatpush1.bf16.msra.mxu0 %v589
    %655 = vmatprep.subr.bf16.mxu0 %v592
    %656 = vmatpush1.bf16.msra.mxu0 %v591
    %657 = vmatprep.subr.bf16.mxu0 %v594
    %658 = vmatpush1.bf16.msra.mxu0 %v593
    %659 = vmatprep.mubr.bf16.mxu0 %v422
    %660 = vmatmul.mubr.bf16.gmra.mrb[0].mxu0 %v421
    %v661 = vpop.f32.mrb[0].mxu0
    %v662 = vadd.f32 %v460, %v661
    %v663 = vpop.f32.mrb[0].mxu0
    %v664 = vadd.f32 %v464, %v663
    %v665 = vpop.f32.mrb[0].mxu0
    %v666 = vpop.f32.mrb[0].mxu0
    %667 = vdwg.mxu0
    %v668 = vmax.f32 %v662, 0.0
    %v669 = vmax.f32 %v664, 0.0
    %v670 = vpack.c.bf16 %v668, %v668
    %v671 = vpack.c.bf16 %v669, %v669
    %v672 = vld [vmem:[#allocation10] sm:$0xf]
    %v673 = vld [vmem:[#allocation10 + $0x4] sm:$0xf]
    %v674 = vld [vmem:[#allocation10 + $0x8] sm:$0xf]
    %v675 = vld [vmem:[#allocation10 + $0xc] sm:$0xf]
    %v676 = vld [vmem:[#allocation10 + $0x10] sm:$0xf]
    %v677 = vld [vmem:[#allocation10 + $0x14] sm:$0xf]
    %v678 = vld [vmem:[#allocation10 + $0x18] sm:$0xf]
    %v679 = vld [vmem:[#allocation10 + $0x1c] sm:$0xf]
    %v680 = vld [vmem:[#allocation10 + $0x20] sm:$0xf]
    %v681 = vld [vmem:[#allocation10 + $0x24] sm:$0xf]
    %v682 = vld [vmem:[#allocation10 + $0x28] sm:$0xf]
    %v683 = vld [vmem:[#allocation10 + $0x2c] sm:$0xf]
    %v684 = vld [vmem:[#allocation10 + $0x30] sm:$0xf]
    %v685 = vld [vmem:[#allocation10 + $0x34] sm:$0xf]
    %v686 = vld [vmem:[#allocation10 + $0x38] sm:$0xf]
    %v687 = vld [vmem:[#allocation10 + $0x3c] sm:$0xf]
    %v688 = vld [vmem:[#allocation10 + $0x40] sm:$0xf]
    %v689 = vld [vmem:[#allocation10 + $0x44] sm:$0xf]
    %v690 = vld [vmem:[#allocation10 + $0x48] sm:$0xf]
    %v691 = vld [vmem:[#allocation10 + $0x4c] sm:$0xf]
    %v692 = vld [vmem:[#allocation10 + $0x50] sm:$0xf]
    %v693 = vld [vmem:[#allocation10 + $0x54] sm:$0xf]
    %v694 = vld [vmem:[#allocation10 + $0x58] sm:$0xf]
    %v695 = vld [vmem:[#allocation10 + $0x5c] sm:$0xf]
    %v696 = vld [vmem:[#allocation10 + $0x60] sm:$0xf]
    %v697 = vld [vmem:[#allocation10 + $0x64] sm:$0xf]
    %v698 = vld [vmem:[#allocation10 + $0x68] sm:$0xf]
    %v699 = vld [vmem:[#allocation10 + $0x6c] sm:$0xf]
    %v700 = vld [vmem:[#allocation10 + $0x70] sm:$0xf]
    %v701 = vld [vmem:[#allocation10 + $0x74] sm:$0xf]
    %v702 = vld [vmem:[#allocation10 + $0x78] sm:$0xf]
    %v703 = vld [vmem:[#allocation10 + $0x7c] sm:$0xf]
    %v704 = vld [vmem:[%s8] sm:$0x1]
    %v706 = vlaneseq
    %v707 = vshrl.u32 %v706, 7
    %v708 = vsub.s32 0, %v707
    %v709 = vrot.slane %v704, %v708
    %v743 = vunpack.c.l.b16 %v672
    %v744 = vunpack.c.l.b16 %v673
    %v745 = vunpack.c.l.b16 %v674
    %v746 = vunpack.c.l.b16 %v675
    %v747 = vunpack.c.l.b16 %v676
    %v748 = vunpack.c.l.b16 %v677
    %v749 = vunpack.c.l.b16 %v678
    %v750 = vunpack.c.l.b16 %v679
    %v751 = vunpack.c.l.b16 %v680
    %v752 = vunpack.c.l.b16 %v681
    %v753 = vunpack.c.l.b16 %v682
    %v754 = vunpack.c.l.b16 %v683
    %v755 = vunpack.c.l.b16 %v684
    %v756 = vunpack.c.l.b16 %v685
    %v757 = vunpack.c.l.b16 %v686
    %v758 = vunpack.c.l.b16 %v687
    %v759 = vunpack.c.l.b16 %v688
    %v760 = vunpack.c.l.b16 %v689
    %v761 = vunpack.c.l.b16 %v690
    %v762 = vunpack.c.l.b16 %v691
    %v763 = vunpack.c.l.b16 %v692
    %v764 = vunpack.c.l.b16 %v693
    %v765 = vunpack.c.l.b16 %v694
    %v766 = vunpack.c.l.b16 %v695
    %v767 = vunpack.c.l.b16 %v696
    %v768 = vunpack.c.l.b16 %v697
    %v769 = vunpack.c.l.b16 %v698
    %v770 = vunpack.c.l.b16 %v699
    %v771 = vunpack.c.l.b16 %v700
    %v772 = vunpack.c.l.b16 %v701
    %v773 = vunpack.c.l.b16 %v702
    %v774 = vunpack.c.l.b16 %v703
    %v775 = vpack.c.b16 %v744, %v743
    %v776 = vpack.c.b16 %v746, %v745
    %v777 = vpack.c.b16 %v748, %v747
    %v778 = vpack.c.b16 %v750, %v749
    %v779 = vpack.c.b16 %v752, %v751
    %v780 = vpack.c.b16 %v754, %v753
    %v781 = vpack.c.b16 %v756, %v755
    %v782 = vpack.c.b16 %v758, %v757
    %v783 = vpack.c.b16 %v760, %v759
    %v784 = vpack.c.b16 %v762, %v761
    %v785 = vpack.c.b16 %v764, %v763
    %v786 = vpack.c.b16 %v766, %v765
    %v787 = vpack.c.b16 %v768, %v767
    %v788 = vpack.c.b16 %v770, %v769
    %v789 = vpack.c.b16 %v772, %v771
    %v790 = vpack.c.b16 %v774, %v773
    %807 = vmatprep.subr.bf16.mxu0 0
    %808 = vmatpush1.bf16.msra.mxu0 %v775
    %809 = vmatprep.subr.bf16.mxu0 0
    %810 = vmatpush1.bf16.msra.mxu0 %v776
    %811 = vmatprep.subr.bf16.mxu0 0
    %812 = vmatpush1.bf16.msra.mxu0 %v777
    %813 = vmatprep.subr.bf16.mxu0 0
    %814 = vmatpush1.bf16.msra.mxu0 %v778
    %815 = vmatprep.subr.bf16.mxu0 0
    %816 = vmatpush1.bf16.msra.mxu0 %v779
    %817 = vmatprep.subr.bf16.mxu0 0
    %818 = vmatpush1.bf16.msra.mxu0 %v780
    %819 = vmatprep.subr.bf16.mxu0 0
    %820 = vmatpush1.bf16.msra.mxu0 %v781
    %821 = vmatprep.subr.bf16.mxu0 0
    %822 = vmatpush1.bf16.msra.mxu0 %v782
    %823 = vmatprep.subr.bf16.mxu0 0
    %824 = vmatpush1.bf16.msra.mxu0 %v783
    %825 = vmatprep.subr.bf16.mxu0 0
    %826 = vmatpush1.bf16.msra.mxu0 %v784
    %827 = vmatprep.subr.bf16.mxu0 0
    %828 = vmatpush1.bf16.msra.mxu0 %v785
    %829 = vmatprep.subr.bf16.mxu0 0
    %830 = vmatpush1.bf16.msra.mxu0 %v786
    %831 = vmatprep.subr.bf16.mxu0 0
    %832 = vmatpush1.bf16.msra.mxu0 %v787
    %833 = vmatprep.subr.bf16.mxu0 0
    %834 = vmatpush1.bf16.msra.mxu0 %v788
    %835 = vmatprep.subr.bf16.mxu0 0
    %836 = vmatpush1.bf16.msra.mxu0 %v789
    %837 = vmatprep.subr.bf16.mxu0 0
    %838 = vmatpush1.bf16.msra.mxu0 %v790
    %839 = vmatprep.mubr.bf16.mxu0 %v671
    %840 = vmatmul.mubr.bf16.gmra.mrb[0].mxu0 %v670
    %v841 = vpop.f32.mrb[0].mxu0
    %v842 = vadd.f32 %v709, %v841
    %v843 = vpop.f32.mrb[0].mxu0
    %v844 = vpop.f32.mrb[0].mxu0
    %v845 = vpop.f32.mrb[0].mxu0
    %846 = vdwg.mxu0
    %847 = vst [vmem:[#allocation11] sm:$0xff] %v842
    // Predicated region
    $region58: #{tpu_custom_call.1} parent=1 // pred_check
      _
    $region59: #{tpu_custom_call.1} parent=1 // pred_check_branch
      %849 = sbr.rel (0) target = $region61
    $region60: #{tpu_custom_call.1} parent=1 // pred_region
      %s851 = ssub.s32 128, 128
      %852 = vsyncadd [#allocation4], %s851
      %s854 = sshll.u32 [#allocation11], 4
      %s855 = int_to_ptr.vmem [resolvable:$true] %s854
      %857 = dma.vmem_to_hbm [thread:$0]  %s855, 128, %s9, [#allocation4]
    $region61: #{tpu_custom_call.1} parent=1 // pred_fallthru
      _
    // Predicated region
    $region62: #{tpu_custom_call.1} parent=1 // pred_check
      _
    $region63: #{tpu_custom_call.1} parent=1 // pred_check_branch
      %859 = sbr.rel (0) target = $region65
    $region64: #{tpu_custom_call.1} parent=1 // pred_region
      %860 = dma.done [#allocation4], 128
    $region65: #{tpu_custom_call.1} parent=1 // pred_fallthru
      _
    %861 = vsyncpa [#allocation3], 1
    %862 = vsyncpa [#allocation6], 1
    %863 = vsyncpa [#allocation9], 1
    %864 = vsyncpa [#allocation4], 1

</llo_original>
